<compile_context>
chip_gen: v7x
topology: tpu7x:2x2x1
jax: 0.10.0
libtpu: 0.0.40
codegen_flags: <defaults>
</compile_context>

<pallas_src>
import functools

import jax
import jax.numpy as jnp
from jax.experimental import pallas as pl
from jax.experimental.pallas import tpu as pltpu

_LANE = 128
_SUBLANE = 8


def _round_up(n, m):
    return ((n + m - 1) // m) * m


def _ac_policy_kernel(x_ref, w1_ref, wh_ref, b1_ref, out_ref, *, num_actions):
    x = x_ref[...]                                           # [Bt, K]

    # fc1 + (eval-mode dropout = identity) + ReLU.
    # b1 row also forces the constant-1 channel (col hidden_dim) to exactly 1;
    # padded hidden columns have zero weight and zero bias -> relu leaves 0.
    h = jnp.dot(x, w1_ref[...], preferred_element_type=jnp.float32)
    h = jnp.maximum(h + b1_ref[0:1, :], 0.0)                 # [Bt, H_pad]

    # Fused heads: one matmul produces fc2 logits (cols [0, O)), the value
    # (col O) and zero pad.  b2/bv ride in via the constant-1 hidden channel,
    # so no second bias add is needed.
    z = jnp.dot(h, wh_ref[...], preferred_element_type=jnp.float32)

    # Sigmoid only on the action logits; value column (and pad) stays linear.
    col = jax.lax.broadcasted_iota(jnp.int32, z.shape, 1)
    out_ref[...] = jnp.where(col < num_actions, jax.nn.sigmoid(z), z).astype(
        out_ref.dtype)


def init_params(key, input_dim, hidden_dim, output_dim):
    """PyTorch nn.Linear-style init (U(-k, k), k = 1/sqrt(fan_in)).
    Weights are stored transposed: [in_features, out_features]."""
    ks = jax.random.split(key, 6)

    def lin(kw, kb, fan_in, fan_out):
        bound = 1.0 / jnp.sqrt(fan_in)
        w = jax.random.uniform(kw, (fan_in, fan_out), jnp.float32, -bound, bound)
        b = jax.random.uniform(kb, (1, fan_out), jnp.float32, -bound, bound)
        return w, b

    w1, b1 = lin(ks[0], ks[1], input_dim, hidden_dim)
    w2, b2 = lin(ks[2], ks[3], hidden_dim, output_dim)
    wv, bv = lin(ks[4], ks[5], hidden_dim, 1)
    return {"w1": w1, "b1": b1, "w2": w2, "b2": b2, "wv": wv, "bv": bv}


def pack_params(params, input_dim, hidden_dim, output_dim):
    """Pad/fuse parameters host-side into lane-aligned arrays.

    Returns:
      w1 : [K8, H_pad]    fc1 weight; K padded only to a sublane multiple (8)
      wh : [H_pad, N_pad] fused heads: cols [0,O)=fc2, col O=value; row
                          `hidden_dim` carries [b2 | bv] (constant-1 channel)
      b1 : [8, H_pad]     row 0 = b1 (padded), with b1[hidden_dim] = 1.0
    """
    k_in = _round_up(input_dim, _SUBLANE)          # no 128-lane padding of K
    h_pad = _round_up(hidden_dim + 1, _LANE)       # +1 for constant-1 channel
    n_pad = _round_up(output_dim + 1, _LANE)       # fc2 | value | zero pad

    w1_p = jnp.zeros((k_in, h_pad), jnp.float32)
    w1_p = w1_p.at[:input_dim, :hidden_dim].set(params["w1"])

    b1_p = jnp.zeros((_SUBLANE, h_pad), jnp.float32)
    b1_p = b1_p.at[0, :hidden_dim].set(params["b1"][0])
    b1_p = b1_p.at[0, hidden_dim].set(1.0)         # constant-1 channel

    wh_p = jnp.zeros((h_pad, n_pad), jnp.float32)
    wh_p = wh_p.at[:hidden_dim, :output_dim].set(params["w2"])
    wh_p = wh_p.at[:hidden_dim, output_dim].set(params["wv"][:, 0])
    wh_p = wh_p.at[hidden_dim, :output_dim].set(params["b2"][0])   # b2
    wh_p = wh_p.at[hidden_dim, output_dim].set(params["bv"][0, 0])  # bv

    return {"w1": w1_p, "wh": wh_p, "b1": b1_p,
            "dims": (input_dim, hidden_dim, output_dim)}


def ac_policy_forward(x, packed, output_dim, *, block_b_max=1024,
                      out_dtype=jnp.float32, x_dtype=None):
    """x: [B, input_dim] float32. packed: output of pack_params.

    out_dtype / x_dtype may be set to jnp.bfloat16 on v6e/v7x to halve
    output / input HBM traffic (loosens numerical parity vs. f32 reference).
    """
    B, d_in = x.shape
    w1, wh, b1 = packed["w1"], packed["wh"], packed["b1"]
    d_in_r, hid_r, out_r = packed["dims"]
    k_in, h_pad = w1.shape
    n_pad = wh.shape[1]

    # Pad batch only to a sublane multiple; pad K only if input_dim % 8 != 0.
    b_pad = _round_up(B, _SUBLANE)
    if b_pad != B or k_in != d_in:
        x_in = jnp.zeros((b_pad, k_in), x.dtype).at[:B, :d_in].set(x)
    else:
        x_in = x
    if x_dtype is not None:
        x_in = x_in.astype(x_dtype)

    # Batch tile: big enough to amortize the ~0.35us per-grid-step overhead,
    # but always >= 2 grid points once b_pad > 8 so both v7x TensorCores get
    # work on the "parallel" batch axis.
    block_b = min(block_b_max,
                  max(_SUBLANE, _round_up(pl.cdiv(b_pad, 2), _SUBLANE)))
    grid = (pl.cdiv(b_pad, block_b),)

    kernel = functools.partial(_ac_policy_kernel, num_actions=output_dim)

    flops = 2 * B * (d_in_r * hid_r + hid_r * (out_r + 1))
    cost = pl.CostEstimate(
        flops=flops,
        transcendentals=B * out_r,
        bytes_accessed=4 * (B * d_in_r + B * (out_r + 1)
                            + w1.size + wh.size + b1.size))

    out_slab = pl.pallas_call(
        kernel,
        out_shape=jax.ShapeDtypeStruct((b_pad, n_pad), out_dtype),
        grid=grid,
        in_specs=[
            pl.BlockSpec((block_b, k_in), lambda i: (i, 0)),   # full-extent K
            pl.BlockSpec((k_in, h_pad), lambda i: (0, 0)),
            pl.BlockSpec((h_pad, n_pad), lambda i: (0, 0)),
            pl.BlockSpec(b1.shape, lambda i: (0, 0)),
        ],
        out_specs=pl.BlockSpec((block_b, n_pad), lambda i: (i, 0)),
        compiler_params=pltpu.CompilerParams(
            dimension_semantics=("parallel",)),
        cost_estimate=cost,
    )(x_in, w1, wh, b1)

    # Single narrow slice of the 128-lane slab, then split.
    head = out_slab[:B, :output_dim + 1]
    out = head[:, :output_dim]
    val = head[:, output_dim:output_dim + 1]
    return out, val


def _reference(x, p):
    h = jnp.maximum(x @ p["w1"] + p["b1"], 0.0)
    val = h @ p["wv"] + p["bv"]
    out = jax.nn.sigmoid(h @ p["w2"] + p["b2"])
    return out, val


if __name__ == "__main__":
    key = jax.random.PRNGKey(0)
    k_x, k_p = jax.random.split(key)

    B, input_dim, hidden_dim, output_dim = 8, 16, 32, 4
    x = jax.random.normal(k_x, (B, input_dim), jnp.float32)
    params = init_params(k_p, input_dim, hidden_dim, output_dim)
    packed = pack_params(params, input_dim, hidden_dim, output_dim)

    out, val = ac_policy_forward(x, packed, output_dim)
    out = jax.block_until_ready(out)
    val = jax.block_until_ready(val)

    ref_out, ref_val = _reference(x, params)
    assert out.shape == (B, output_dim) and val.shape == (B, 1)
    assert jnp.allclose(out, ref_out, atol=1e-5, rtol=1e-5)
    assert jnp.allclose(val, ref_val, atol=1e-5, rtol=1e-5)

    print("KERNEL_OK")
</pallas_src>

<mosaic_0001>
module attributes {stable_mosaic.version = 11 : i64} {
  func.func @_ac_policy_kernel(%arg0: i32, %arg1: memref<8x16xf32, #tpu.memory_space<vmem>>, %arg2: memref<16x128xf32, #tpu.memory_space<vmem>>, %arg3: memref<128x128xf32, #tpu.memory_space<vmem>>, %arg4: memref<8x128xf32, #tpu.memory_space<vmem>>, %arg5: memref<8x128xf32, #tpu.memory_space<vmem>>) attributes {dimension_semantics = [#tpu.dimension_semantics<parallel>], iteration_bounds = array<i64: 1>, scalar_prefetch = 0 : i64, scratch_operands = 0 : i64, tpu.core_type = #tpu.core_type<tc>, window_params = [{transform_indices = @transform_0, window_bounds = array<i64: 8, 16>}, {pipeline_mode = #tpu.pipeline_mode<synchronous>, transform_indices = @transform_1, window_bounds = array<i64: 16, 128>}, {pipeline_mode = #tpu.pipeline_mode<synchronous>, transform_indices = @transform_2, window_bounds = array<i64: 128, 128>}, {pipeline_mode = #tpu.pipeline_mode<synchronous>, transform_indices = @transform_3, window_bounds = array<i64: 8, 128>}, {transform_indices = @transform_4, window_bounds = array<i64: 8, 128>}]} {
    %c0 = arith.constant 0 : index
    %c0_0 = arith.constant 0 : index
    %0 = vector.load %arg1[%c0, %c0_0] : memref<8x16xf32, #tpu.memory_space<vmem>>, vector<8x16xf32>
    %c0_1 = arith.constant 0 : index
    %c0_2 = arith.constant 0 : index
    %1 = vector.load %arg2[%c0_1, %c0_2] : memref<16x128xf32, #tpu.memory_space<vmem>>, vector<16x128xf32>
    %cst = arith.constant dense<0.000000e+00> : vector<8x128xf32>
    %2 = tpu.matmul %0, %1, %cst {dimension_numbers = #tpu.dot_dimension_numbers<[1], [0], [0], [1], [0, 0, 1, 1], [], []>} : vector<8x16xf32>, vector<16x128xf32>, vector<8x128xf32> -> vector<8x128xf32>
    %c0_3 = arith.constant 0 : index
    %c0_4 = arith.constant 0 : index
    %3 = vector.load %arg4[%c0_3, %c0_4] : memref<8x128xf32, #tpu.memory_space<vmem>>, vector<1x128xf32>
    %4 = vector.broadcast %3 : vector<1x128xf32> to vector<8x128xf32>
    %5 = arith.addf %2, %4 : vector<8x128xf32>
    %cst_5 = arith.constant 0.000000e+00 : f32
    %6 = vector.broadcast %cst_5 : f32 to vector<8x128xf32>
    %7 = arith.maximumf %5, %6 : vector<8x128xf32>
    %c0_6 = arith.constant 0 : index
    %c0_7 = arith.constant 0 : index
    %8 = vector.load %arg3[%c0_6, %c0_7] : memref<128x128xf32, #tpu.memory_space<vmem>>, vector<128x128xf32>
    %cst_8 = arith.constant dense<0.000000e+00> : vector<8x128xf32>
    %9 = tpu.matmul %7, %8, %cst_8 {dimension_numbers = #tpu.dot_dimension_numbers<[1], [0], [0], [1], [0, 0, 1, 1], [], []>} : vector<8x128xf32>, vector<128x128xf32>, vector<8x128xf32> -> vector<8x128xf32>
    %10 = tpu.iota {dimensions = array<i32: 1>} : vector<8x128xi32>
    %c4_i32 = arith.constant 4 : i32
    %11 = vector.broadcast %c4_i32 : i32 to vector<8x128xi32>
    %12 = arith.cmpi slt, %10, %11 : vector<8x128xi32>
    %13 = arith.negf %9 : vector<8x128xf32>
    %14 = math.exp %13 : vector<8x128xf32>
    %cst_9 = arith.constant 1.000000e+00 : f32
    %15 = vector.broadcast %cst_9 : f32 to vector<8x128xf32>
    %16 = arith.addf %15, %14 : vector<8x128xf32>
    %17 = arith.divf %15, %16 : vector<8x128xf32>
    %18 = arith.select %12, %17, %9 : vector<8x128xi1>, vector<8x128xf32>
    %c0_10 = arith.constant 0 : index
    %c0_11 = arith.constant 0 : index
    %19 = vector.load %arg5[%c0_10, %c0_11] : memref<8x128xf32, #tpu.memory_space<vmem>>, vector<8x128xf32>
    tpu.vector_store %arg5[%c0_10, %c0_11], %18 {strides = array<i32>} : memref<8x128xf32, #tpu.memory_space<vmem>>, vector<8x128xf32>,
    return
  }
  func.func @transform_0(%arg0: i32) -> (i32, i32) {
    %c0_i32 = arith.constant 0 : i32
    %c0_i32_0 = arith.constant 0 : i32
    return %arg0, %c0_i32 : i32, i32
  }
  func.func @transform_1(%arg0: i32) -> (i32, i32) {
    %c0_i32 = arith.constant 0 : i32
    %c0_i32_0 = arith.constant 0 : i32
    %c0_i32_1 = arith.constant 0 : i32
    return %c0_i32, %c0_i32_0 : i32, i32
  }
  func.func @transform_2(%arg0: i32) -> (i32, i32) {
    %c0_i32 = arith.constant 0 : i32
    %c0_i32_0 = arith.constant 0 : i32
    %c0_i32_1 = arith.constant 0 : i32
    return %c0_i32, %c0_i32_0 : i32, i32
  }
  func.func @transform_3(%arg0: i32) -> (i32, i32) {
    %c0_i32 = arith.constant 0 : i32
    %c0_i32_0 = arith.constant 0 : i32
    %c0_i32_1 = arith.constant 0 : i32
    return %c0_i32, %c0_i32_0 : i32, i32
  }
  func.func @transform_4(%arg0: i32) -> (i32, i32) {
    %c0_i32 = arith.constant 0 : i32
    %c0_i32_0 = arith.constant 0 : i32
    return %arg0, %c0_i32 : i32, i32
  }
}

</mosaic_0001>

<llo_original>
// kernel: tpu_custom_call.1
$region0: #{tpu_custom_call.1}
  #allocation0 [shape = 'u32[]', space=smem, size = 0x4, offset = 0x4, fixed_abs, tag = 'smem constant byte address 0x4 - core index']
  #allocation1 [shape = 'u32[144,128]{1,0:T(1,128)}', space=vmem, size = 0x12000, scoped, tag = 'internal scratch']
  %s0 = inlined_call_operand.hbm [shape: f32[8,16], index: 0, kind: input, shape index: {}]
  %s1 = inlined_call_operand.hbm [shape: f32[16,128], index: 1, kind: input, shape index: {}]
  %s2 = inlined_call_operand.hbm [shape: f32[128,128], index: 2, kind: input, shape index: {}]
  %s3 = inlined_call_operand.vmem [shape: f32[8,128], index: 3, kind: input, shape index: {}]
  %s4 = inlined_call_operand.hbm [shape: f32[8,128], index: 4, kind: output, shape index: {}]
  %s5 = sld [smem:[#allocation0]]
  $region38: #{tpu_custom_call.1} parent=0
    _
  %s7 = ssub.s32 1, %s5
  %s8 = scalar_select 0, %s7, %s5
  $region1: #{tpu_custom_call.1} parent=0
    #allocation2 [shape = 'u8[4096]{0}', space=vmem, size = 0x1000, scoped, tag = 'input window, operand 0, single buffered']
    #allocation3 [shape = 's32[1]{0}', space=sflag, size = 0x4, scoped, tag = 'scoped memory for tpu_custom_call.1']
    #allocation4 [shape = 's32[1]{0}', space=sflag, size = 0x4, scoped, tag = 'scoped memory for tpu_custom_call.1']
    #allocation5 [shape = 'u8[8192]{0}', space=vmem, size = 0x2000, scoped, tag = 'input window, operand 1, single buffered']
    #allocation6 [shape = 's32[1]{0}', space=sflag, size = 0x4, scoped, tag = 'scoped memory for tpu_custom_call.1']
    #allocation7 [shape = 'u8[65536]{0}', space=vmem, size = 0x10000, scoped, tag = 'input window, operand 2, single buffered']
    #allocation8 [shape = 'u8[4096]{0}', space=vmem, size = 0x1000, scoped, tag = 'output window, operand 0, single buffered']
    %9 = vsyncpa [#allocation3], 0
    %10 = vsyncpa [#allocation6], 0
    %11 = vsyncpa [#allocation4], 0
    // Predicated region
    $region2: #{tpu_custom_call.1} parent=1 // pred_check
      _
    $region3: #{tpu_custom_call.1} parent=1 // pred_check_branch
      %13 = sbr.rel (0) target = $region5
    $region4: #{tpu_custom_call.1} parent=1 // pred_region
      %s15 = ssub.s32 128, 128
      %16 = vsyncadd [#allocation3], %s15
      %s18 = sshll.u32 [#allocation2], 4
      %s19 = int_to_ptr.vmem [resolvable:$true] %s18
      %21 = dma.hbm_to_vmem [thread:$0]  %s0, 128, %s19, [#allocation3]
    $region5: #{tpu_custom_call.1} parent=1 // pred_fallthru
      _
    // Predicated region
    $region6: #{tpu_custom_call.1} parent=1 // pred_check
      _
    $region7: #{tpu_custom_call.1} parent=1 // pred_check_branch
      %23 = sbr.rel (0) target = $region9
    $region8: #{tpu_custom_call.1} parent=1 // pred_region
      %s25 = ssub.s32 256, 256
      %26 = vsyncadd [#allocation6], %s25
      %s27 = sshll.u32 [#allocation5], 4
      %s28 = int_to_ptr.vmem [resolvable:$true] %s27
      %33 = dma.hbm_to_vmem [thread:$0]  %s1, 256, %s28, [#allocation6], 128, 128, 8
    $region9: #{tpu_custom_call.1} parent=1 // pred_fallthru
      _
    // Predicated region
    $region10: #{tpu_custom_call.1} parent=1 // pred_check
      _
    $region11: #{tpu_custom_call.1} parent=1 // pred_check_branch
      %35 = sbr.rel (0) target = $region13
    $region12: #{tpu_custom_call.1} parent=1 // pred_region
      %s37 = ssub.s32 2048, 2048
      %38 = vsyncadd [#allocation6], %s37
      %s39 = sshll.u32 [#allocation7], 4
      %s40 = int_to_ptr.vmem [resolvable:$true] %s39
      %45 = dma.hbm_to_vmem [thread:$0]  %s2, 2048, %s40, [#allocation6], 128, 128, 8
    $region13: #{tpu_custom_call.1} parent=1 // pred_fallthru
      _
    // Predicated region
    $region14: #{tpu_custom_call.1} parent=1 // pred_check
      _
    $region15: #{tpu_custom_call.1} parent=1 // pred_check_branch
      %47 = sbr.rel (0) target = $region17
    $region16: #{tpu_custom_call.1} parent=1 // pred_region
      _
    $region17: #{tpu_custom_call.1} parent=1 // pred_fallthru
      _
    // Predicated region
    $region18: #{tpu_custom_call.1} parent=1 // pred_check
      _
    $region19: #{tpu_custom_call.1} parent=1 // pred_check_branch
      %49 = sbr.rel (0) target = $region21
    $region20: #{tpu_custom_call.1} parent=1 // pred_region
      %50 = dma.done [#allocation3], 128
    $region21: #{tpu_custom_call.1} parent=1 // pred_fallthru
      _
    // Predicated region
    $region22: #{tpu_custom_call.1} parent=1 // pred_check
      _
    $region23: #{tpu_custom_call.1} parent=1 // pred_check_branch
      %52 = sbr.rel (0) target = $region25
    $region24: #{tpu_custom_call.1} parent=1 // pred_region
      %53 = dma.done [#allocation6], 256
    $region25: #{tpu_custom_call.1} parent=1 // pred_fallthru
      _
    // Predicated region
    $region26: #{tpu_custom_call.1} parent=1 // pred_check
      _
    $region27: #{tpu_custom_call.1} parent=1 // pred_check_branch
      %55 = sbr.rel (0) target = $region29
    $region28: #{tpu_custom_call.1} parent=1 // pred_region
      %56 = dma.done [#allocation6], 2048
    $region29: #{tpu_custom_call.1} parent=1 // pred_fallthru
      _
    %v57 = vld [vmem:[#allocation2] sm:$0xff]
    %v58 = vld [vmem:[#allocation5] sm:$0xff]
    %v59 = vld [vmem:[#allocation5 + $0x8] sm:$0xff]
    %v60 = vld [vmem:[%s3] sm:$0x1]
    %v61 = vlaneseq
    %v62 = vshrl.u32 %v61, 7
    %v63 = vsub.s32 0, %v62
    %v64 = vrot.slane %v60, %v63
    %vm65 = vcmask 130048
    %v67 = vsel %vm65, %v57, 0
    %69 = vmatprep.subr.mxu0 0.0
    %70 = vmatpush1.msra.mxu0 %v58
    %71 = vmatprep.subr.mxu0 0.0
    %72 = vmatpush1.msra.mxu0 %v59
    %73 = vmatprep.subr.mxu0 0.0
    %74 = vmatpush1.msra.mxu0 0.0
    %75 = vmatprep.subr.mxu0 0.0
    %76 = vmatpush1.msra.mxu0 0.0
    %77 = vmatprep.subr.mxu0 0.0
    %78 = vmatpush1.msra.mxu0 0.0
    %79 = vmatprep.subr.mxu0 0.0
    %80 = vmatpush1.msra.mxu0 0.0
    %81 = vmatprep.subr.mxu0 0.0
    %82 = vmatpush1.msra.mxu0 0.0
    %83 = vmatprep.subr.mxu0 0.0
    %84 = vmatpush1.msra.mxu0 0.0
    %85 = vmatprep.subr.mxu0 0.0
    %86 = vmatpush1.msra.mxu0 0.0
    %87 = vmatprep.subr.mxu0 0.0
    %88 = vmatpush1.msra.mxu0 0.0
    %89 = vmatprep.subr.mxu0 0.0
    %90 = vmatpush1.msra.mxu0 0.0
    %91 = vmatprep.subr.mxu0 0.0
    %92 = vmatpush1.msra.mxu0 0.0
    %93 = vmatprep.subr.mxu0 0.0
    %94 = vmatpush1.msra.mxu0 0.0
    %95 = vmatprep.subr.mxu0 0.0
    %96 = vmatpush1.msra.mxu0 0.0
    %97 = vmatprep.subr.mxu0 0.0
    %98 = vmatpush1.msra.mxu0 0.0
    %99 = vmatprep.subr.mxu0 0.0
    %100 = vmatpush1.msra.mxu0 0.0
    %101 = vmatprep.subr.mxu0 0.0
    %102 = vmatpush1.msra.mxu0 0.0
    %103 = vmatprep.subr.mxu0 0.0
    %104 = vmatpush1.msra.mxu0 0.0
    %105 = vmatprep.subr.mxu0 0.0
    %106 = vmatpush1.msra.mxu0 0.0
    %107 = vmatprep.subr.mxu0 0.0
    %108 = vmatpush1.msra.mxu0 0.0
    %109 = vmatprep.subr.mxu0 0.0
    %110 = vmatpush1.msra.mxu0 0.0
    %111 = vmatprep.subr.mxu0 0.0
    %112 = vmatpush1.msra.mxu0 0.0
    %113 = vmatprep.subr.mxu0 0.0
    %114 = vmatpush1.msra.mxu0 0.0
    %115 = vmatprep.subr.mxu0 0.0
    %116 = vmatpush1.msra.mxu0 0.0
    %117 = vmatprep.subr.mxu0 0.0
    %118 = vmatpush1.msra.mxu0 0.0
    %119 = vmatprep.subr.mxu0 0.0
    %120 = vmatpush1.msra.mxu0 0.0
    %121 = vmatprep.subr.mxu0 0.0
    %122 = vmatpush1.msra.mxu0 0.0
    %123 = vmatprep.subr.mxu0 0.0
    %124 = vmatpush1.msra.mxu0 0.0
    %125 = vmatprep.subr.mxu0 0.0
    %126 = vmatpush1.msra.mxu0 0.0
    %127 = vmatprep.subr.mxu0 0.0
    %128 = vmatpush1.msra.mxu0 0.0
    %129 = vmatprep.subr.mxu0 0.0
    %130 = vmatpush1.msra.mxu0 0.0
    %131 = vmatprep.subr.mxu0 0.0
    %132 = vmatpush1.msra.mxu0 0.0
    %133 = vmatprep.mubr.f32.mxu0 0.0
    %134 = vmatmul.mubr.f32.gmra.mrb[0].mxu0 %v67
    %v135 = vpop.f32.mrb[0].mxu0
    %v136 = vadd.f32 %v64, %v135
    %v137 = vpop.f32.mrb[0].mxu0
    %138 = vdwg.mxu0
    %v139 = vmax.f32 %v136, 0.0
    %v140 = vld [vmem:[#allocation7] sm:$0xff]
    %v141 = vld [vmem:[#allocation7 + $0x8] sm:$0xff]
    %v142 = vld [vmem:[#allocation7 + $0x10] sm:$0xff]
    %v143 = vld [vmem:[#allocation7 + $0x18] sm:$0xff]
    %v144 = vld [vmem:[#allocation7 + $0x20] sm:$0xff]
    %v145 = vld [vmem:[#allocation7 + $0x28] sm:$0xff]
    %v146 = vld [vmem:[#allocation7 + $0x30] sm:$0xff]
    %v147 = vld [vmem:[#allocation7 + $0x38] sm:$0xff]
    %v148 = vld [vmem:[#allocation7 + $0x40] sm:$0xff]
    %v149 = vld [vmem:[#allocation7 + $0x48] sm:$0xff]
    %v150 = vld [vmem:[#allocation7 + $0x50] sm:$0xff]
    %v151 = vld [vmem:[#allocation7 + $0x58] sm:$0xff]
    %v152 = vld [vmem:[#allocation7 + $0x60] sm:$0xff]
    %v153 = vld [vmem:[#allocation7 + $0x68] sm:$0xff]
    %v154 = vld [vmem:[#allocation7 + $0x70] sm:$0xff]
    %v155 = vld [vmem:[#allocation7 + $0x78] sm:$0xff]
    %156 = vmatprep.subr.mxu0 0.0
    %157 = vmatpush1.msra.mxu0 %v140
    %158 = vmatprep.subr.mxu0 0.0
    %159 = vmatpush1.msra.mxu0 %v141
    %160 = vmatprep.subr.mxu0 0.0
    %161 = vmatpush1.msra.mxu0 %v142
    %162 = vmatprep.subr.mxu0 0.0
    %163 = vmatpush1.msra.mxu0 %v143
    %164 = vmatprep.subr.mxu0 0.0
    %165 = vmatpush1.msra.mxu0 %v144
    %166 = vmatprep.subr.mxu0 0.0
    %167 = vmatpush1.msra.mxu0 %v145
    %168 = vmatprep.subr.mxu0 0.0
    %169 = vmatpush1.msra.mxu0 %v146
    %170 = vmatprep.subr.mxu0 0.0
    %171 = vmatpush1.msra.mxu0 %v147
    %172 = vmatprep.subr.mxu0 0.0
    %173 = vmatpush1.msra.mxu0 %v148
    %174 = vmatprep.subr.mxu0 0.0
    %175 = vmatpush1.msra.mxu0 %v149
    %176 = vmatprep.subr.mxu0 0.0
    %177 = vmatpush1.msra.mxu0 %v150
    %178 = vmatprep.subr.mxu0 0.0
    %179 = vmatpush1.msra.mxu0 %v151
    %180 = vmatprep.subr.mxu0 0.0
    %181 = vmatpush1.msra.mxu0 %v152
    %182 = vmatprep.subr.mxu0 0.0
    %183 = vmatpush1.msra.mxu0 %v153
    %184 = vmatprep.subr.mxu0 0.0
    %185 = vmatpush1.msra.mxu0 %v154
    %186 = vmatprep.subr.mxu0 0.0
    %187 = vmatpush1.msra.mxu0 %v155
    %188 = vmatprep.subr.mxu0 0.0
    %189 = vmatpush1.msra.mxu0 0.0
    %190 = vmatprep.subr.mxu0 0.0
    %191 = vmatpush1.msra.mxu0 0.0
    %192 = vmatprep.subr.mxu0 0.0
    %193 = vmatpush1.msra.mxu0 0.0
    %194 = vmatprep.subr.mxu0 0.0
    %195 = vmatpush1.msra.mxu0 0.0
    %196 = vmatprep.subr.mxu0 0.0
    %197 = vmatpush1.msra.mxu0 0.0
    %198 = vmatprep.subr.mxu0 0.0
    %199 = vmatpush1.msra.mxu0 0.0
    %200 = vmatprep.subr.mxu0 0.0
    %201 = vmatpush1.msra.mxu0 0.0
    %202 = vmatprep.subr.mxu0 0.0
    %203 = vmatpush1.msra.mxu0 0.0
    %204 = vmatprep.subr.mxu0 0.0
    %205 = vmatpush1.msra.mxu0 0.0
    %206 = vmatprep.subr.mxu0 0.0
    %207 = vmatpush1.msra.mxu0 0.0
    %208 = vmatprep.subr.mxu0 0.0
    %209 = vmatpush1.msra.mxu0 0.0
    %210 = vmatprep.subr.mxu0 0.0
    %211 = vmatpush1.msra.mxu0 0.0
    %212 = vmatprep.subr.mxu0 0.0
    %213 = vmatpush1.msra.mxu0 0.0
    %214 = vmatprep.subr.mxu0 0.0
    %215 = vmatpush1.msra.mxu0 0.0
    %216 = vmatprep.subr.mxu0 0.0
    %217 = vmatpush1.msra.mxu0 0.0
    %218 = vmatprep.subr.mxu0 0.0
    %219 = vmatpush1.msra.mxu0 0.0
    %220 = vmatprep.mubr.f32.mxu0 0.0
    %221 = vmatmul.mubr.f32.gmra.mrb[0].mxu0 %v139
    %v222 = vpop.f32.mrb[0].mxu0
    %v223 = vadd.f32 0.0, %v222
    %v224 = vpop.f32.mrb[0].mxu0
    %225 = vdwg.mxu0
    %v226 = vlaneseq
    %v227 = vand.u32 %v226, 127
    %vm228 = vcmp.lt.s32.totalorder %v227, 4
    %v229 = vxor.u32 %v223, 2147483648
    %v230 = vmul.f32 %v229, 1.442695
    %v231 = vpow.pop %v230
    %v232 = vadd.f32 %v231, 1.0
    %v233 = vrcp.pop %v232
    %v234 = vmul.f32 1.0, %v233
    %v235 = vsel %vm228, %v234, %v223
    %236 = vst [vmem:[#allocation8] sm:$0xff] %v235
    // Predicated region
    $region30: #{tpu_custom_call.1} parent=1 // pred_check
      _
    $region31: #{tpu_custom_call.1} parent=1 // pred_check_branch
      %238 = sbr.rel (0) target = $region33
    $region32: #{tpu_custom_call.1} parent=1 // pred_region
      %s240 = ssub.s32 128, 128
      %241 = vsyncadd [#allocation4], %s240
      %s243 = sshll.u32 [#allocation8], 4
      %s244 = int_to_ptr.vmem [resolvable:$true] %s243
      %246 = dma.vmem_to_hbm [thread:$0]  %s244, 128, %s4, [#allocation4]
    $region33: #{tpu_custom_call.1} parent=1 // pred_fallthru
      _
    // Predicated region
    $region34: #{tpu_custom_call.1} parent=1 // pred_check
      _
    $region35: #{tpu_custom_call.1} parent=1 // pred_check_branch
      %248 = sbr.rel (0) target = $region37
    $region36: #{tpu_custom_call.1} parent=1 // pred_region
      %249 = dma.done [#allocation4], 128
    $region37: #{tpu_custom_call.1} parent=1 // pred_fallthru
      _
    %250 = vsyncpa [#allocation3], 1
    %251 = vsyncpa [#allocation6], 1
    %252 = vsyncpa [#allocation4], 1

</llo_original>
